<compile_context>
chip_gen: v7x
topology: tpu7x:2x2x1
jax: 0.10.0
libtpu: 0.0.40
codegen_flags: <defaults>
</compile_context>

<pallas_src>
import functools

import jax
import jax.numpy as jnp
from jax.experimental import pallas as pl
from jax.experimental.pallas import tpu as pltpu


def _bn_pad_kernel(scale_ref, shift_ref, x_ref, o_ref, *, pad_pixels):
    """One grid step: Cb flattened (batch*channel) planes.

    scale_ref/shift_ref: (Cb, 1, 1) f32  folded BN scale / shift; shift == BN(0) == pad value
    x_ref:               (Cb, H, W)
    o_ref:               (Cb, Hp, Wp)    with Hp = H + 2p, Wp = W + 2p
    """
    p = pad_pixels
    cb, h, w = x_ref.shape
    _, hp, wp = o_ref.shape

    scale = scale_ref[...]   # (Cb, 1, 1) f32
    shift = shift_ref[...]   # (Cb, 1, 1) f32

    # Algebraic identity: out = zero_pad(x * scale) + shift
    #   interior -> x*scale + shift == BN(x);  border -> 0 + shift == BN(0) == pad value.
    y = x_ref[...].astype(jnp.float32) * scale              # (Cb, H, W)

    if p > 0:
        zh = jnp.zeros((cb, p, w), jnp.float32)
        y = jnp.concatenate([zh, y, zh], axis=1)             # (Cb, Hp, W)
        zw = jnp.zeros((cb, hp, p), jnp.float32)
        y = jnp.concatenate([zw, y, zw], axis=2)             # (Cb, Hp, Wp)

    # Single aligned full-block store (no masked border strips, no offset interior store).
    o_ref[...] = (y + shift).astype(o_ref.dtype)


def _round_up(a, m):
    return -(-a // m) * m


def _pick_block_rows(nc, h, w, hp, wp, itemsize, budget_bytes=8 << 20):
    """Largest Cb whose *tile-rounded* VMEM footprint per buffer set stays <= budget_bytes.

    Footprint per flattened row = (8,128)-padded input tile + output tile + the f32
    (1,1)-trailing scale/shift tiles.  Total live VMEM ~= 2 * budget (double buffering),
    which stays well under the 32 MiB limit below (and v7x's 64 MiB physical VMEM).
    Also keeps >= 2 grid steps when nc >= 2 so v7x's two TensorCores both get work.
    """
    sub = 8 * max(1, 4 // max(1, itemsize))   # sublane multiple: 8 (f32), 16 (bf16), 32 (i8)
    per_in = _round_up(h, sub) * _round_up(w, 128) * itemsize
    per_out = _round_up(hp, sub) * _round_up(wp, 128) * itemsize
    per_ss = 2 * 8 * 128 * 4                   # scale + shift: one (8,128) f32 tile each
    per_row = per_in + per_out + per_ss

    cb = max(1, budget_bytes // per_row)
    cb = min(cb, nc)
    if nc >= 2 and -(-nc // cb) < 2:           # guarantee >= 2 grid steps when possible
        cb = -(-nc // 2)
    return int(cb)


def bn_and_pad(x, weight, bias, running_mean, running_var, *, eps=1e-5, pad_pixels=1):
    """x: (N, C, H, W); weight/bias (or None for affine=False) and running stats: (C,).

    Eval-mode BatchNorm2d followed by border padding with the per-channel BN(0) value.
    """
    N, C, H, W = x.shape
    p = int(pad_pixels)
    Hp, Wp = H + 2 * p, W + 2 * p
    NC = N * C

    # Fold BN into per-channel scale/shift (tiny glue math, f32).
    rm = running_mean.astype(jnp.float32)
    rv = running_var.astype(jnp.float32)
    inv_std = jax.lax.rsqrt(rv + jnp.float32(eps))
    w_f = jnp.ones((C,), jnp.float32) if weight is None else weight.astype(jnp.float32)
    b_f = jnp.zeros((C,), jnp.float32) if bias is None else bias.astype(jnp.float32)
    scale_1d = w_f * inv_std                       # (C,)
    shift_1d = b_f - rm * scale_1d                 # (C,) == BN(0) == pad value

    # Flatten (N, C) -> one leading dim; replicate per-channel params across N (tiny arrays).
    x_flat = x.reshape(NC, H, W)
    scale = jnp.tile(scale_1d, N).reshape(NC, 1, 1)
    shift = jnp.tile(shift_1d, N).reshape(NC, 1, 1)

    Cb = _pick_block_rows(NC, H, W, Hp, Wp, x.dtype.itemsize)
    grid = (pl.cdiv(NC, Cb),)

    kernel = functools.partial(_bn_pad_kernel, pad_pixels=p)

    out_flat = pl.pallas_call(
        kernel,
        out_shape=jax.ShapeDtypeStruct((NC, Hp, Wp), x.dtype),
        grid_spec=pltpu.PrefetchScalarGridSpec(
            num_scalar_prefetch=0,
            grid=grid,
            in_specs=[
                pl.BlockSpec((Cb, 1, 1), lambda i: (i, 0, 0)),   # scale
                pl.BlockSpec((Cb, 1, 1), lambda i: (i, 0, 0)),   # shift
                pl.BlockSpec((Cb, H, W), lambda i: (i, 0, 0)),   # x
            ],
            out_specs=pl.BlockSpec((Cb, Hp, Wp), lambda i: (i, 0, 0)),
        ),
        compiler_params=pltpu.CompilerParams(
            dimension_semantics=("parallel",),
            vmem_limit_bytes=32 * 1024 * 1024,
        ),
    )(scale, shift, x_flat)

    return out_flat.reshape(N, C, Hp, Wp)


def _reference(x, weight, bias, running_mean, running_var, eps, pad_pixels):
    inv_std = 1.0 / jnp.sqrt(running_var + eps)
    scale = weight * inv_std
    shift = bias - running_mean * scale
    y = x * scale[None, :, None, None] + shift[None, :, None, None]
    p = pad_pixels
    if p > 0:
        out = jnp.pad(y, ((0, 0), (0, 0), (p, p), (p, p)))
        pv = shift[None, :, None, None]
        out = out.at[:, :, :p, :].set(pv)
        out = out.at[:, :, -p:, :].set(pv)
        out = out.at[:, :, :, :p].set(pv)
        out = out.at[:, :, :, -p:].set(pv)
        return out
    return y


if __name__ == "__main__":
    key = jax.random.PRNGKey(0)
    k_x, k_w, k_b, k_m, k_v, k_x2 = jax.random.split(key, 6)

    N, C, H, W = 2, 4, 16, 16
    pad_pixels = 2
    eps = 1e-5

    x = jax.random.normal(k_x, (N, C, H, W), dtype=jnp.float32)
    # Deterministic synthetic BN parameters (affine=True, track_running_stats=True).
    weight = 1.0 + 0.1 * jax.random.normal(k_w, (C,), dtype=jnp.float32)
    bias = 0.1 * jax.random.normal(k_b, (C,), dtype=jnp.float32)
    running_mean = 0.1 * jax.random.normal(k_m, (C,), dtype=jnp.float32)
    running_var = jnp.abs(1.0 + 0.1 * jax.random.normal(k_v, (C,), dtype=jnp.float32))

    out = jax.block_until_ready(
        bn_and_pad(x, weight, bias, running_mean, running_var, eps=eps, pad_pixels=pad_pixels))
    ref = _reference(x, weight, bias, running_mean, running_var, eps, pad_pixels)
    assert out.shape == (N, C, H + 2 * pad_pixels, W + 2 * pad_pixels)
    assert jnp.allclose(out, ref, atol=1e-5, rtol=1e-5), "mismatch vs reference"

    # pad_pixels == 0 fast path.
    out0 = jax.block_until_ready(
        bn_and_pad(x, weight, bias, running_mean, running_var, eps=eps, pad_pixels=0))
    ref0 = _reference(x, weight, bias, running_mean, running_var, eps, 0)
    assert jnp.allclose(out0, ref0, atol=1e-5, rtol=1e-5), "mismatch vs reference (p=0)"

    # Non-dividing channel count exercises the ragged last block; also the affine=False path.
    N2, C2, H2, W2 = 1, 5, 8, 8
    x2 = jax.random.normal(k_x2, (N2, C2, H2, W2), dtype=jnp.float32)
    rm2 = 0.1 * jnp.arange(C2, dtype=jnp.float32)
    rv2 = 1.0 + 0.05 * jnp.arange(C2, dtype=jnp.float32)
    out2 = jax.block_until_ready(bn_and_pad(x2, None, None, rm2, rv2, eps=eps, pad_pixels=1))
    ref2 = _reference(x2, jnp.ones((C2,), jnp.float32), jnp.zeros((C2,), jnp.float32),
                      rm2, rv2, eps, 1)
    assert out2.shape == (N2, C2, H2 + 2, W2 + 2)
    assert jnp.allclose(out2, ref2, atol=1e-5, rtol=1e-5), "mismatch vs reference (ragged)"

    print("KERNEL_OK")
</pallas_src>

<mosaic_0001>
module attributes {stable_mosaic.version = 11 : i64} {
  func.func @_bn_pad_kernel(%arg0: i32, %arg1: memref<4x1x1xf32, #tpu.memory_space<vmem>>, %arg2: memref<4x1x1xf32, #tpu.memory_space<vmem>>, %arg3: memref<4x16x16xf32, #tpu.memory_space<vmem>>, %arg4: memref<4x20x20xf32, #tpu.memory_space<vmem>>) attributes {dimension_semantics = [#tpu.dimension_semantics<parallel>], iteration_bounds = array<i64: 2>, scalar_prefetch = 0 : i64, scratch_operands = 0 : i64, tpu.core_type = #tpu.core_type<tc>, window_params = [{transform_indices = @transform_0, window_bounds = array<i64: 4, 1, 1>}, {transform_indices = @transform_1, window_bounds = array<i64: 4, 1, 1>}, {transform_indices = @transform_2, window_bounds = array<i64: 4, 16, 16>}, {transform_indices = @transform_3, window_bounds = array<i64: 4, 20, 20>}]} {
    %c0 = arith.constant 0 : index
    %c0_0 = arith.constant 0 : index
    %c0_1 = arith.constant 0 : index
    %0 = vector.load %arg1[%c0, %c0_0, %c0_1] : memref<4x1x1xf32, #tpu.memory_space<vmem>>, vector<4x1x1xf32>
    %c0_2 = arith.constant 0 : index
    %c0_3 = arith.constant 0 : index
    %c0_4 = arith.constant 0 : index
    %1 = vector.load %arg2[%c0_2, %c0_3, %c0_4] : memref<4x1x1xf32, #tpu.memory_space<vmem>>, vector<4x1x1xf32>
    %c0_5 = arith.constant 0 : index
    %c0_6 = arith.constant 0 : index
    %c0_7 = arith.constant 0 : index
    %2 = vector.load %arg3[%c0_5, %c0_6, %c0_7] : memref<4x16x16xf32, #tpu.memory_space<vmem>>, vector<4x16x16xf32>
    %3 = vector.broadcast %0 : vector<4x1x1xf32> to vector<4x16x16xf32>
    %4 = arith.mulf %2, %3 : vector<4x16x16xf32>
    %cst = arith.constant 0.000000e+00 : f32
    %5 = vector.broadcast %cst : f32 to vector<4x2x16xf32>
    %6 = tpu.concatenate %5, %4, %5 in 1 : vector<4x2x16xf32>, vector<4x16x16xf32>, vector<4x2x16xf32> -> vector<4x20x16xf32>
    %cst_8 = arith.constant 0.000000e+00 : f32
    %7 = vector.broadcast %cst_8 : f32 to vector<4x20x2xf32>
    %8 = tpu.concatenate %7, %6, %7 in 2 : vector<4x20x2xf32>, vector<4x20x16xf32>, vector<4x20x2xf32> -> vector<4x20x20xf32>
    %9 = vector.broadcast %1 : vector<4x1x1xf32> to vector<4x20x20xf32>
    %10 = arith.addf %8, %9 : vector<4x20x20xf32>
    %c0_9 = arith.constant 0 : index
    %c0_10 = arith.constant 0 : index
    %c0_11 = arith.constant 0 : index
    %11 = vector.load %arg4[%c0_9, %c0_10, %c0_11] : memref<4x20x20xf32, #tpu.memory_space<vmem>>, vector<4x20x20xf32>
    tpu.vector_store %arg4[%c0_9, %c0_10, %c0_11], %10 {strides = array<i32>} : memref<4x20x20xf32, #tpu.memory_space<vmem>>, vector<4x20x20xf32>,
    return
  }
  func.func @transform_0(%arg0: i32) -> (i32, i32, i32) {
    %c0_i32 = arith.constant 0 : i32
    %c0_i32_0 = arith.constant 0 : i32
    %c0_i32_1 = arith.constant 0 : i32
    return %arg0, %c0_i32, %c0_i32_0 : i32, i32, i32
  }
  func.func @transform_1(%arg0: i32) -> (i32, i32, i32) {
    %c0_i32 = arith.constant 0 : i32
    %c0_i32_0 = arith.constant 0 : i32
    %c0_i32_1 = arith.constant 0 : i32
    return %arg0, %c0_i32, %c0_i32_0 : i32, i32, i32
  }
  func.func @transform_2(%arg0: i32) -> (i32, i32, i32) {
    %c0_i32 = arith.constant 0 : i32
    %c0_i32_0 = arith.constant 0 : i32
    %c0_i32_1 = arith.constant 0 : i32
    return %arg0, %c0_i32, %c0_i32_0 : i32, i32, i32
  }
  func.func @transform_3(%arg0: i32) -> (i32, i32, i32) {
    %c0_i32 = arith.constant 0 : i32
    %c0_i32_0 = arith.constant 0 : i32
    %c0_i32_1 = arith.constant 0 : i32
    return %arg0, %c0_i32, %c0_i32_0 : i32, i32, i32
  }
}

</mosaic_0001>

<llo_original>
// kernel: tpu_custom_call.1
$region0: #{tpu_custom_call.1}
  #allocation0 [shape = 'u32[]', space=smem, size = 0x4, offset = 0x4, fixed_abs, tag = 'smem constant byte address 0x4 - core index']
  #allocation1 [shape = 'u32[144,128]{1,0:T(1,128)}', space=vmem, size = 0x12000, scoped, tag = 'internal scratch']
  %s0 = inlined_call_operand.vmem [shape: f32[8,1,1], index: 0, kind: input, shape index: {}]
  %s1 = inlined_call_operand.vmem [shape: f32[8,1,1], index: 1, kind: input, shape index: {}]
  %s2 = inlined_call_operand.hbm [shape: f32[8,16,16], index: 2, kind: input, shape index: {}]
  %s3 = inlined_call_operand.vmem [shape: f32[8,20,20], index: 3, kind: output, shape index: {}]
  %s4 = sld [smem:[#allocation0]]
  $region49: #{tpu_custom_call.1} parent=0
    _
  %s6 = ssub.s32 1, %s4
  %s7 = scalar_select 0, %s6, %s4
  $region1: #{tpu_custom_call.1} parent=0
    #allocation2 [shape = 'u8[65536]{0}', space=vmem, size = 0x10000, scoped, tag = 'input window, operand 2']
    #allocation3 [shape = 's32[2]{0}', space=sflag, size = 0x8, scoped, tag = 'scoped memory for tpu_custom_call.1']
    %8 = vsyncpa [#allocation3], 0
    %s9 = scalar_lea.sflag [#allocation3], 1
    %10 = vsyncpa %s9, 0
    loop: start=0, step=1, limit=4
    $region2: #{tpu_custom_call.1} parent=1 // loop_pre_header
      _
    $region3: #{tpu_custom_call.1} parent=1 // loop_header
      %s12 = sphi 0, %s16
      %p13 = scmp.ge.s32.totalorder %s12, 4
      %s22 = sphi 0, %s24
      %s25 = sphi 0, %s22
      %s26 = sphi 0, %s25
      %s42 = sphi 0, %s26
      %s48 = sphi 0, %s50
      %s51 = sphi 0, %s48
      %s52 = sphi 0, %s51
      %s68 = sphi 0, %s52
      %s74 = sphi 0, %s76
      %s77 = sphi 0, %s74
      %s78 = sphi 0, %s77
      %s94 = sphi 0, %s78
      %s100 = sphi 0, %s102
      %s103 = sphi 0, %s100
      %s104 = sphi 0, %s103
      %s120 = sphi 0, %s104
    $region4: #{tpu_custom_call.1} parent=1 // loop_header_branch
      %15 = sbr.rel (%p13) target = $region8
    $region5: #{tpu_custom_call.1} parent=1 // loop_body
      %s17 = ssub.s32 %s12, 1
      %s18 = ssub.s32 %s12, 2
      %s19 = sadd.s32 %s12, 1
      %s20 = ssub.s32 %s12, %s19
      %p21 = scmp.eq.s32.totalorder %s20, 0
      %s23 = sadd.s32 %s22, 1
      %s24 = scalar_select %p21, %s22, %s23
      %p27 = pneg %p21
      %p28 = scmp.eq.s32.totalorder %s12, 1
      %p29 = por %p27, %p28
      %p30 = scmp.ne.s32.totalorder %s22, %s25
      %p31 = scmp.eq.s32.totalorder %s12, 0
      %p32 = por %p30, %p31
      %p33 = scmp.ne.s32.totalorder %s22, %s25
      %p34 = scmp.eq.s32.totalorder %s17, 1
      %p35 = por %p33, %p34
      %p36 = scmp.ne.s32.totalorder %s25, %s26
      %p37 = scmp.eq.s32.totalorder %s17, 0
      %p38 = por %p36, %p37
      %p39 = scmp.ne.s32.totalorder %s25, %s26
      %p40 = scmp.eq.s32.totalorder %s18, 1
      %p41 = por %p39, %p40
      %p43 = scmp.ne.s32.totalorder %s26, %s42
      %p44 = scmp.eq.s32.totalorder %s18, 0
      %p45 = por %p43, %p44
      %s46 = ssub.s32 %s12, %s19
      %p47 = scmp.eq.s32.totalorder %s46, 0
      %s49 = sadd.s32 %s48, 1
      %s50 = scalar_select %p47, %s48, %s49
      %p53 = pneg %p47
      %p54 = scmp.eq.s32.totalorder %s12, 1
      %p55 = por %p53, %p54
      %p56 = scmp.ne.s32.totalorder %s48, %s51
      %p57 = scmp.eq.s32.totalorder %s12, 0
      %p58 = por %p56, %p57
      %p59 = scmp.ne.s32.totalorder %s48, %s51
      %p60 = scmp.eq.s32.totalorder %s17, 1
      %p61 = por %p59, %p60
      %p62 = scmp.ne.s32.totalorder %s51, %s52
      %p63 = scmp.eq.s32.totalorder %s17, 0
      %p64 = por %p62, %p63
      %p65 = scmp.ne.s32.totalorder %s51, %s52
      %p66 = scmp.eq.s32.totalorder %s18, 1
      %p67 = por %p65, %p66
      %p69 = scmp.ne.s32.totalorder %s52, %s68
      %p70 = scmp.eq.s32.totalorder %s18, 0
      %p71 = por %p69, %p70
      %s72 = ssub.s32 %s12, %s19
      %p73 = scmp.eq.s32.totalorder %s72, 0
      %s75 = sadd.s32 %s74, 1
      %s76 = scalar_select %p73, %s74, %s75
      %p79 = pneg %p73
      %p80 = scmp.eq.s32.totalorder %s12, 1
      %p81 = por %p79, %p80
      %p82 = scmp.ne.s32.totalorder %s74, %s77
      %p83 = scmp.eq.s32.totalorder %s12, 0
      %p84 = por %p82, %p83
      %p85 = scmp.ne.s32.totalorder %s74, %s77
      %p86 = scmp.eq.s32.totalorder %s17, 1
      %p87 = por %p85, %p86
      %p88 = scmp.ne.s32.totalorder %s77, %s78
      %p89 = scmp.eq.s32.totalorder %s17, 0
      %p90 = por %p88, %p89
      %p91 = scmp.ne.s32.totalorder %s77, %s78
      %p92 = scmp.eq.s32.totalorder %s18, 1
      %p93 = por %p91, %p92
      %p95 = scmp.ne.s32.totalorder %s78, %s94
      %p96 = scmp.eq.s32.totalorder %s18, 0
      %p97 = por %p95, %p96
      %s98 = ssub.s32 %s12, %s19
      %p99 = scmp.eq.s32.totalorder %s98, 0
      %s101 = sadd.s32 %s100, 1
      %s102 = scalar_select %p99, %s100, %s101
      %p105 = pneg %p99
      %p106 = scmp.eq.s32.totalorder %s12, 1
      %p107 = por %p105, %p106
      %p108 = scmp.ne.s32.totalorder %s100, %s103
      %p109 = scmp.eq.s32.totalorder %s12, 0
      %p110 = por %p108, %p109
      %p111 = scmp.ne.s32.totalorder %s100, %s103
      %p112 = scmp.eq.s32.totalorder %s17, 1
      %p113 = por %p111, %p112
      %p114 = scmp.ne.s32.totalorder %s103, %s104
      %p115 = scmp.eq.s32.totalorder %s17, 0
      %p116 = por %p114, %p115
      %p117 = scmp.ne.s32.totalorder %s103, %s104
      %p118 = scmp.eq.s32.totalorder %s18, 1
      %p119 = por %p117, %p118
      %p121 = scmp.ne.s32.totalorder %s104, %s120
      %p122 = scmp.eq.s32.totalorder %s18, 0
      %p123 = por %p121, %p122
      %p124 = scmp.le.s32.totalorder 1, %s12
      %p125 = scmp.lt.s32.totalorder %s12, 3
      %p126 = pnand %p124, %p125
      %p127 = pneg %p126
      // Predicated region
      $region9: #{tpu_custom_call.1} parent=5 // pred_check
        _
      $region10: #{tpu_custom_call.1} parent=5 // pred_check_branch
        %129 = sbr.rel (%p126) target = $region12
      $region11: #{tpu_custom_call.1} parent=5 // pred_region
        %s130 = ssub.s32 %s12, 1
      $region12: #{tpu_custom_call.1} parent=5 // pred_fallthru
        _
      %p131 = scmp.lt.s32.totalorder %s12, 2
      // Predicated region
      $region13: #{tpu_custom_call.1} parent=5 // pred_check
        %p132 = pneg %p131
      $region14: #{tpu_custom_call.1} parent=5 // pred_check_branch
        %134 = sbr.rel (%p132) target = $region16
      $region15: #{tpu_custom_call.1} parent=5 // pred_region
        // Predicated region
        $region17: #{tpu_custom_call.1} parent=15 // pred_check
          %p135 = pneg %p32
        $region18: #{tpu_custom_call.1} parent=15 // pred_check_branch
          %137 = sbr.rel (%p135) target = $region20
        $region19: #{tpu_custom_call.1} parent=15 // pred_region
          %s138 = smul.u32 4, %s12
          %p139 = scmp.lt.s32.totalorder %s138, 7
          %s140 = scalar_select %p139, %s138, 7
          %s141 = scalar_lea.vmem %s0, %s140
          %s142 = smul.u32 4, %s12
        $region20: #{tpu_custom_call.1} parent=15 // pred_fallthru
          _
        // Predicated region
        $region21: #{tpu_custom_call.1} parent=15 // pred_check
          %p143 = pneg %p58
        $region22: #{tpu_custom_call.1} parent=15 // pred_check_branch
          %145 = sbr.rel (%p143) target = $region24
        $region23: #{tpu_custom_call.1} parent=15 // pred_region
          %s146 = smul.u32 4, %s12
          %p147 = scmp.lt.s32.totalorder %s146, 7
          %s148 = scalar_select %p147, %s146, 7
          %s149 = scalar_lea.vmem %s1, %s148
          %s150 = smul.u32 4, %s12
        $region24: #{tpu_custom_call.1} parent=15 // pred_fallthru
          _
        // Predicated region
        $region25: #{tpu_custom_call.1} parent=15 // pred_check
          %p151 = pneg %p84
        $region26: #{tpu_custom_call.1} parent=15 // pred_check_branch
          %153 = sbr.rel (%p151) target = $region28
        $region27: #{tpu_custom_call.1} parent=15 // pred_region
          %s154 = sand.u32 %s74, 1
          %s155 = scalar_lea.sflag [#allocation3], %s154
          %s156 = sand.u32 %s74, 1
          %s157 = smul.addr %s156, 64
          %s158 = scalar_lea.vmem [#allocation2], %s157
          %s159 = smul.u32 4, %s12
          %s161 = ssub.s32 1024, 1024
          %162 = vsyncadd %s155, %s161
          %s163 = smul.addr %s159, 2
          %s164 = smul.addr %s163, 128
          %s165 = scalar_lea.hbm %s2, %s164
          %s166 = sshll.u32 %s158, 4
          %s167 = int_to_ptr.vmem [resolvable:$true] %s166
          %172 = dma.hbm_to_vmem [thread:$0]  %s165, 1024, %s167, %s155, 128, 128, 8
        $region28: #{tpu_custom_call.1} parent=15 // pred_fallthru
          _
      $region16: #{tpu_custom_call.1} parent=5 // pred_fallthru
        _
      %p173 = scmp.le.s32.totalorder 1, %s12
      %p174 = scmp.lt.s32.totalorder %s12, 3
      %p175 = pnand %p173, %p174
      %p176 = pneg %p175
      // Predicated region
      $region29: #{tpu_custom_call.1} parent=5 // pred_check
        _
      $region30: #{tpu_custom_call.1} parent=5 // pred_check_branch
        %178 = sbr.rel (%p175) target = $region32
      $region31: #{tpu_custom_call.1} parent=5 // pred_region
        %s179 = ssub.s32 %s12, 1
        %s180 = sand.u32 %s77, 1
        %s181 = scalar_lea.sflag [#allocation3], %s180
        %s182 = sand.u32 %s77, 1
        %s183 = smul.addr %s182, 64
        %s184 = scalar_lea.vmem [#allocation2], %s183
        // Predicated region
        $region33: #{tpu_custom_call.1} parent=31 // pred_check
          %p185 = pneg %p90
        $region34: #{tpu_custom_call.1} parent=31 // pred_check_branch
          %187 = sbr.rel (%p185) target = $region36
        $region35: #{tpu_custom_call.1} parent=31 // pred_region
          %188 = dma.done %s181, 1024
        $region36: #{tpu_custom_call.1} parent=31 // pred_fallthru
          _
        %s189 = smul.u32 4, %s17
        %p190 = scmp.lt.s32.totalorder %s189, 7
        %s191 = scalar_select %p190, %s189, 7
        %s192 = scalar_lea.vmem %s0, %s191
        %p193 = pneg %p38
        %p194 = pneg %p35
        %s195 = smul.u32 4, %s17
        %p196 = scmp.lt.s32.totalorder %s195, 7
        %s197 = scalar_select %p196, %s195, 7
        %s198 = scalar_lea.vmem %s1, %s197
        %p199 = pneg %p64
        %p200 = pneg %p61
        %s201 = sand.u32 %s77, 1
        %s202 = scalar_lea.sflag [#allocation3], %s201
        %s203 = sand.u32 %s77, 1
        %s204 = smul.addr %s203, 64
        %s205 = scalar_lea.vmem [#allocation2], %s204
        %p206 = pneg %p90
        %p207 = pneg %p87
        %p208 = pneg %p116
        %p209 = pneg %p113
        %s210 = smul.u32 4, %s17
        %p211 = scmp.lt.s32.totalorder %s210, 7
        %s212 = scalar_select %p211, %s210, 7
        %s213 = smul.addr %s212, 3
        %s214 = smul.addr %s213, 8
        %s215 = scalar_lea.vmem %s3, %s214
        %s216 = smul.u32 4, %s17
        %p217 = scmp.lt.s32.totalorder %s216, 7
        %s218 = scalar_select %p217, %s216, 7
        %s219 = scalar_lea.vmem %s0, %s218
        %s220 = smul.u32 4, %s17
        %s221 = smul.u32 4, %s17
        %p222 = scmp.lt.s32.totalorder %s221, 7
        %s223 = scalar_select %p222, %s221, 7
        %s224 = scalar_lea.vmem %s1, %s223
        %s225 = smul.u32 4, %s17
        %s226 = smul.u32 4, %s17
        %s227 = smul.u32 4, %s17
        %p228 = scmp.lt.s32.totalorder %s227, 7
        %s229 = scalar_select %p228, %s227, 7
        %s230 = smul.addr %s229, 3
        %s231 = smul.addr %s230, 8
        %s232 = scalar_lea.vmem %s3, %s231
        %s233 = smul.u32 4, %s17
        %v234 = vld [vmem:[%s219] sm:$0x1]
        %v235 = vld [vmem:[%s219 + $0x1] sm:$0x1]
        %v236 = vld [vmem:[%s219 + $0x2] sm:$0x1]
        %v237 = vld [vmem:[%s219 + $0x3] sm:$0x1]
        %v238 = vld [vmem:[%s224] sm:$0x1]
        %v239 = vld [vmem:[%s224 + $0x1] sm:$0x1]
        %v240 = vld [vmem:[%s224 + $0x2] sm:$0x1]
        %v241 = vld [vmem:[%s224 + $0x3] sm:$0x1]
        %v242 = vld [vmem:[%s184] sm:$0xff]
        %v243 = vld [vmem:[%s184 + $0x8] sm:$0xff]
        %v244 = vld [vmem:[%s184 + $0x10] sm:$0xff]
        %v245 = vld [vmem:[%s184 + $0x18] sm:$0xff]
        %v246 = vld [vmem:[%s184 + $0x20] sm:$0xff]
        %v247 = vld [vmem:[%s184 + $0x28] sm:$0xff]
        %v248 = vld [vmem:[%s184 + $0x30] sm:$0xff]
        %v249 = vld [vmem:[%s184 + $0x38] sm:$0xff]
        %v254 = vlaneseq
        %v255 = vshrl.u32 %v254, 7
        %v256 = vsub.s32 0, %v255
        %v257 = vrot.slane %v234, %v256
        %v258 = vlaneseq
        %v259 = vshrl.u32 %v258, 7
        %v260 = vsub.s32 0, %v259
        %v261 = vrot.slane %v235, %v260
        %v262 = vlaneseq
        %v263 = vshrl.u32 %v262, 7
        %v264 = vsub.s32 0, %v263
        %v265 = vrot.slane %v236, %v264
        %v266 = vlaneseq
        %v267 = vshrl.u32 %v266, 7
        %v268 = vsub.s32 0, %v267
        %v269 = vrot.slane %v237, %v268
        %270 = vset.pattern.permute.xlu0 0
        %271 = vperm.xlu0 %270, %v257
        %v272 = vpop.permute.xlu0 %271
        %274 = vset.pattern.permute.xlu0 0
        %275 = vperm.xlu0 %274, %v261
        %v276 = vpop.permute.xlu0 %275
        %278 = vset.pattern.permute.xlu0 0
        %279 = vperm.xlu0 %278, %v265
        %v280 = vpop.permute.xlu0 %279
        %282 = vset.pattern.permute.xlu0 0
        %283 = vperm.xlu0 %282, %v269
        %v284 = vpop.permute.xlu0 %283
        %v286 = vmul.f32 %v242, %v272
        %v287 = vmul.f32 %v243, %v272
        %v288 = vmul.f32 %v244, %v276
        %v289 = vmul.f32 %v245, %v276
        %v290 = vmul.f32 %v246, %v280
        %v291 = vmul.f32 %v247, %v280
        %v292 = vmul.f32 %v248, %v284
        %v293 = vmul.f32 %v249, %v284
        %vm302 = vcmask 1041408
        %v303 = vrot.slane %v286, 6
        %v304 = vrot.slane %v287, 6
        %v305 = vsel %vm302, %v303, %v304
        %v306 = vrot.slane %v288, 6
        %v307 = vrot.slane %v289, 6
        %v308 = vsel %vm302, %v306, %v307
        %v309 = vrot.slane %v290, 6
        %v310 = vrot.slane %v291, 6
        %v311 = vsel %vm302, %v309, %v310
        %v312 = vrot.slane %v292, 6
        %v313 = vrot.slane %v293, 6
        %v314 = vsel %vm302, %v312, %v313
        %v323 = vsel %vm302, 0.0, %v303
        %v324 = vsel %vm302, 0.0, %v306
        %v325 = vsel %vm302, 0.0, %v309
        %v326 = vsel %vm302, 0.0, %v312
        %v327 = vsel %vm302, %v304, 0.0
        %v328 = vsel %vm302, %v307, 0.0
        %v329 = vsel %vm302, %v310, 0.0
        %v330 = vsel %vm302, %v313, 0.0
        %339 = vrot.lane.b32.xlu0 %v323, 2
        %v340 = vpop.permute.xlu0 %339
        %341 = vrot.lane.b32.xlu0 %v305, 2
        %v342 = vpop.permute.xlu0 %341
        %343 = vrot.lane.b32.xlu0 %v327, 2
        %v344 = vpop.permute.xlu0 %343
        %345 = vrot.lane.b32.xlu0 %v324, 2
        %v346 = vpop.permute.xlu0 %345
        %347 = vrot.lane.b32.xlu0 %v308, 2
        %v348 = vpop.permute.xlu0 %347
        %349 = vrot.lane.b32.xlu0 %v328, 2
        %v350 = vpop.permute.xlu0 %349
        %351 = vrot.lane.b32.xlu0 %v325, 2
        %v352 = vpop.permute.xlu0 %351
        %353 = vrot.lane.b32.xlu0 %v311, 2
        %v354 = vpop.permute.xlu0 %353
        %355 = vrot.lane.b32.xlu0 %v329, 2
        %v356 = vpop.permute.xlu0 %355
        %357 = vrot.lane.b32.xlu0 %v326, 2
        %v358 = vpop.permute.xlu0 %357
        %359 = vrot.lane.b32.xlu0 %v314, 2
        %v360 = vpop.permute.xlu0 %359
        %361 = vrot.lane.b32.xlu0 %v330, 2
        %v362 = vpop.permute.xlu0 %361
        %vm375 = vcmask 15360
        %v376 = vsel %vm375, 0.0, %v340
        %v377 = vsel %vm375, 0.0, %v342
        %v378 = vsel %vm375, 0.0, %v344
        %v379 = vsel %vm375, 0.0, %v346
        %v380 = vsel %vm375, 0.0, %v348
        %v381 = vsel %vm375, 0.0, %v350
        %v382 = vsel %vm375, 0.0, %v352
        %v383 = vsel %vm375, 0.0, %v354
        %v384 = vsel %vm375, 0.0, %v356
        %v385 = vsel %vm375, 0.0, %v358
        %v386 = vsel %vm375, 0.0, %v360
        %v387 = vsel %vm375, 0.0, %v362
        %vm388 = vcmask 146432
        %v389 = vsel %vm388, %v376, 0.0
        %v390 = vsel %vm388, %v377, 0.0
        %v391 = vsel %vm388, %v378, 0.0
        %v392 = vsel %vm388, %v379, 0.0
        %v393 = vsel %vm388, %v380, 0.0
        %v394 = vsel %vm388, %v381, 0.0
        %v395 = vsel %vm388, %v382, 0.0
        %v396 = vsel %vm388, %v383, 0.0
        %v397 = vsel %vm388, %v384, 0.0
        %v398 = vsel %vm388, %v385, 0.0
        %v399 = vsel %vm388, %v386, 0.0
        %v400 = vsel %vm388, %v387, 0.0
        %v405 = vlaneseq
        %v406 = vshrl.u32 %v405, 7
        %v407 = vsub.s32 0, %v406
        %v408 = vrot.slane %v238, %v407
        %v409 = vlaneseq
        %v410 = vshrl.u32 %v409, 7
        %v411 = vsub.s32 0, %v410
        %v412 = vrot.slane %v239, %v411
        %v413 = vlaneseq
        %v414 = vshrl.u32 %v413, 7
        %v415 = vsub.s32 0, %v414
        %v416 = vrot.slane %v240, %v415
        %v417 = vlaneseq
        %v418 = vshrl.u32 %v417, 7
        %v419 = vsub.s32 0, %v418
        %v420 = vrot.slane %v241, %v419
        %421 = vset.pattern.permute.xlu0 0
        %422 = vperm.xlu0 %421, %v408
        %v423 = vpop.permute.xlu0 %422
        %425 = vset.pattern.permute.xlu0 0
        %426 = vperm.xlu0 %425, %v412
        %v427 = vpop.permute.xlu0 %426
        %429 = vset.pattern.permute.xlu0 0
        %430 = vperm.xlu0 %429, %v416
        %v431 = vpop.permute.xlu0 %430
        %433 = vset.pattern.permute.xlu0 0
        %434 = vperm.xlu0 %433, %v420
        %v435 = vpop.permute.xlu0 %434
        %v437 = vadd.f32 %v389, %v423
        %v438 = vadd.f32 %v390, %v423
        %v439 = vadd.f32 %v391, %v423
        %v440 = vadd.f32 %v392, %v427
        %v441 = vadd.f32 %v393, %v427
        %v442 = vadd.f32 %v394, %v427
        %v443 = vadd.f32 %v395, %v431
        %v444 = vadd.f32 %v396, %v431
        %v445 = vadd.f32 %v397, %v431
        %v446 = vadd.f32 %v398, %v435
        %v447 = vadd.f32 %v399, %v435
        %v448 = vadd.f32 %v400, %v435
        %vm449 = vcmask 162816
        %450 = vst.msk [vmem:[%s232] sm:$0xff] %vm449, %v437
        %451 = vst.msk [vmem:[%s232 + $0x8] sm:$0xff] %vm449, %v438
        %vm452 = vcmask 158720
        %453 = vst.msk [vmem:[%s232 + $0x10] sm:$0xf] %vm452, %v439
        %454 = vst.msk [vmem:[%s232 + $0x18] sm:$0xff] %vm449, %v440
        %455 = vst.msk [vmem:[%s232 + $0x20] sm:$0xff] %vm449, %v441
        %456 = vst.msk [vmem:[%s232 + $0x28] sm:$0xf] %vm452, %v442
        %457 = vst.msk [vmem:[%s232 + $0x30] sm:$0xff] %vm449, %v443
        %458 = vst.msk [vmem:[%s232 + $0x38] sm:$0xff] %vm449, %v444
        %459 = vst.msk [vmem:[%s232 + $0x40] sm:$0xf] %vm452, %v445
        %460 = vst.msk [vmem:[%s232 + $0x48] sm:$0xff] %vm449, %v446
        %461 = vst.msk [vmem:[%s232 + $0x50] sm:$0xff] %vm449, %v447
        %462 = vst.msk [vmem:[%s232 + $0x58] sm:$0xf] %vm452, %v448
        %s463 = smul.u32 4, %s17
        %p464 = scmp.lt.s32.totalorder %s463, 7
        %s465 = scalar_select %p464, %s463, 7
        %s466 = smul.addr %s465, 3
        %s467 = smul.addr %s466, 8
        %s468 = scalar_lea.vmem %s3, %s467
        // Predicated region
        $region37: #{tpu_custom_call.1} parent=31 // pred_check
          %p469 = pneg %p113
        $region38: #{tpu_custom_call.1} parent=31 // pred_check_branch
          %471 = sbr.rel (%p469) target = $region40
        $region39: #{tpu_custom_call.1} parent=31 // pred_region
          %s472 = smul.u32 4, %s17
        $region40: #{tpu_custom_call.1} parent=31 // pred_fallthru
          _
      $region32: #{tpu_custom_call.1} parent=5 // pred_fallthru
        _
      %p473 = scmp.le.s32.totalorder 2, %s12
      // Predicated region
      $region41: #{tpu_custom_call.1} parent=5 // pred_check
        %p474 = pneg %p473
      $region42: #{tpu_custom_call.1} parent=5 // pred_check_branch
        %476 = sbr.rel (%p474) target = $region44
      $region43: #{tpu_custom_call.1} parent=5 // pred_region
        %s477 = ssub.s32 %s12, 2
        // Predicated region
        $region45: #{tpu_custom_call.1} parent=43 // pred_check
          %p478 = pneg %p119
        $region46: #{tpu_custom_call.1} parent=43 // pred_check_branch
          %480 = sbr.rel (%p478) target = $region48
        $region47: #{tpu_custom_call.1} parent=43 // pred_region
          %s481 = smul.u32 4, %s18
          %p482 = scmp.lt.s32.totalorder %s481, 7
          %s483 = scalar_select %p482, %s481, 7
          %s484 = smul.addr %s483, 3
          %s485 = smul.addr %s484, 8
          %s486 = scalar_lea.vmem %s3, %s485
        $region48: #{tpu_custom_call.1} parent=43 // pred_fallthru
          _
      $region44: #{tpu_custom_call.1} parent=5 // pred_fallthru
        _
    $region6: #{tpu_custom_call.1} parent=1 // loop_footer
      %s16 = sadd.s32 1, %s12
    $region7: #{tpu_custom_call.1} parent=1 // loop_footer_branch
      %11 = sbr.rel target = $region3
    $region8: #{tpu_custom_call.1} parent=1 // loop_exit
      _
    %487 = vsyncpa [#allocation3], 1
    %s488 = scalar_lea.sflag [#allocation3], 1
    %489 = vsyncpa %s488, 1

</llo_original>
